<compile_context>
chip_gen: v7x
topology: tpu7x:2x2x1
jax: 0.10.0
libtpu: 0.0.40
codegen_flags: <defaults>
</compile_context>

<pallas_src>
import functools

import jax
import jax.numpy as jnp
from jax.experimental import pallas as pl
from jax.experimental.pallas import tpu as pltpu


def _round_up(x, m):
    return ((x + m - 1) // m) * m


def _layernorm_kernel(x_ref, o_ref, *, eps, n_rows):
    # x_ref / o_ref: [N, TC] tiles in VMEM.  Reductions stay on the sublane
    # axis (axis=0) -> XLU, no reshapes/transposes inside the kernel.
    x = x_ref[...].astype(jnp.float32)
    inv_n = 1.0 / n_rows

    mean = jnp.sum(x, axis=0, keepdims=True) * inv_n
    xc = x - mean

    # Population (unbiased=False) std of the centered data.
    var = jnp.sum(xc * xc, axis=0, keepdims=True) * inv_n
    std = jnp.sqrt(var)

    # Exact reciprocal (division): approx=True (EUP vrcp) is cheaper but its
    # error margin is too close to the 1e-5 validation tolerance.
    o_ref[...] = (xc / (std + eps)).astype(o_ref.dtype)


def _choose_col_tile(n_rows, n_cols, itemsize, vmem_budget=16 * 1024 * 1024):
    """Pick a lane-dense (multiple-of-128) channel tile that fits VMEM.

    Budget assumes ~8 live tiles of f32 width (2x double-buffered input,
    2x double-buffered output, plus f32 compute temporaries).
    """
    c128 = _round_up(n_cols, 128)
    eff = max(itemsize, 4)  # compute happens in f32
    max_tc = max(128, (vmem_budget // (8 * n_rows * eff) // 128) * 128)
    candidates = [tc for tc in (512, 384, 256, 128) if tc <= max_tc] or [128]
    # Minimize padding, then prefer the widest tile.
    best = min(candidates, key=lambda tc: (_round_up(c128, tc), -tc))
    tc = min(best, c128)
    cp = _round_up(c128, tc)
    return tc, cp


def layer_norm(x, eps=1e-5):
    """x: [N, C] array. Returns (x - mean_0) / (std_0 + eps)."""
    n, c = x.shape
    itemsize = jnp.dtype(x.dtype).itemsize
    tc, cp = _choose_col_tile(n, c, itemsize)

    x_in = x if cp == c else jnp.pad(x, ((0, 0), (0, cp - c)))
    grid = (cp // tc,)

    out = pl.pallas_call(
        functools.partial(_layernorm_kernel, eps=eps, n_rows=n),
        out_shape=jax.ShapeDtypeStruct((n, cp), x.dtype),
        grid_spec=pltpu.PrefetchScalarGridSpec(
            num_scalar_prefetch=0,
            grid=grid,
            in_specs=[pl.BlockSpec((n, tc), lambda j: (0, j))],
            out_specs=pl.BlockSpec((n, tc), lambda j: (0, j)),
        ),
        compiler_params=pltpu.CompilerParams(
            dimension_semantics=("parallel",),
            vmem_limit_bytes=32 * 1024 * 1024,
        ),
    )(x_in)

    return out if cp == c else out[:, :c]


if __name__ == "__main__":
    key = jax.random.PRNGKey(0)

    N, C = 8, 32  # (num nodes, in_channels)
    x = jax.random.normal(key, (N, C), dtype=jnp.float32)

    # Parameters exist in the PyTorch module (ones / zeros) but are unused by
    # forward(); kept here only for shape fidelity.
    weight = jnp.ones((C,), dtype=jnp.float32)
    bias = jnp.zeros((C,), dtype=jnp.float32)

    out = layer_norm(x, eps=1e-5)
    out = jax.block_until_ready(out)

    # Reference check in plain JAX (same semantics as the PyTorch forward).
    mean = jnp.mean(x, axis=0, keepdims=True)
    xc = x - mean
    std = jnp.sqrt(jnp.mean(xc * xc, axis=0, keepdims=True))
    ref = xc / (std + 1e-5)
    assert jnp.allclose(out, ref, atol=1e-5, rtol=1e-5)

    print("KERNEL_OK")
</pallas_src>

<mosaic_0001>
module attributes {stable_mosaic.version = 11 : i64} {
  func.func @_layernorm_kernel(%arg0: i32, %arg1: memref<8x128xf32, #tpu.memory_space<vmem>>, %arg2: memref<8x128xf32, #tpu.memory_space<vmem>>) attributes {dimension_semantics = [#tpu.dimension_semantics<parallel>], iteration_bounds = array<i64: 1>, scalar_prefetch = 0 : i64, scratch_operands = 0 : i64, tpu.core_type = #tpu.core_type<tc>, window_params = [{transform_indices = @transform_0, window_bounds = array<i64: 8, 128>}, {transform_indices = @transform_1, window_bounds = array<i64: 8, 128>}]} {
    %c0 = arith.constant 0 : index
    %c0_0 = arith.constant 0 : index
    %0 = vector.load %arg1[%c0, %c0_0] : memref<8x128xf32, #tpu.memory_space<vmem>>, vector<8x128xf32>
    %cst = arith.constant dense<0.000000e+00> : vector<128xf32>
    %1 = vector.multi_reduction <add>, %0, %cst [0] : vector<8x128xf32> to vector<128xf32>
    %2 = vector.shape_cast %1 : vector<128xf32> to vector<1x128xf32>
    %cst_1 = arith.constant 1.250000e-01 : f32
    %3 = vector.broadcast %cst_1 : f32 to vector<1x128xf32>
    %4 = arith.mulf %2, %3 : vector<1x128xf32>
    %5 = vector.broadcast %4 : vector<1x128xf32> to vector<8x128xf32>
    %6 = arith.subf %0, %5 : vector<8x128xf32>
    %7 = arith.mulf %6, %6 : vector<8x128xf32>
    %cst_2 = arith.constant dense<0.000000e+00> : vector<128xf32>
    %8 = vector.multi_reduction <add>, %7, %cst_2 [0] : vector<8x128xf32> to vector<128xf32>
    %9 = vector.shape_cast %8 : vector<128xf32> to vector<1x128xf32>
    %cst_3 = arith.constant 1.250000e-01 : f32
    %10 = vector.broadcast %cst_3 : f32 to vector<1x128xf32>
    %11 = arith.mulf %9, %10 : vector<1x128xf32>
    %12 = math.sqrt %11 : vector<1x128xf32>
    %cst_4 = arith.constant 9.99999974E-6 : f32
    %13 = vector.broadcast %cst_4 : f32 to vector<1x128xf32>
    %14 = arith.addf %12, %13 : vector<1x128xf32>
    %15 = vector.broadcast %14 : vector<1x128xf32> to vector<8x128xf32>
    %16 = arith.divf %6, %15 : vector<8x128xf32>
    %c0_5 = arith.constant 0 : index
    %c0_6 = arith.constant 0 : index
    %17 = vector.load %arg2[%c0_5, %c0_6] : memref<8x128xf32, #tpu.memory_space<vmem>>, vector<8x128xf32>
    tpu.vector_store %arg2[%c0_5, %c0_6], %16 {strides = array<i32>} : memref<8x128xf32, #tpu.memory_space<vmem>>, vector<8x128xf32>,
    return
  }
  func.func @transform_0(%arg0: i32) -> (i32, i32) {
    %c0_i32 = arith.constant 0 : i32
    %c0_i32_0 = arith.constant 0 : i32
    return %c0_i32, %arg0 : i32, i32
  }
  func.func @transform_1(%arg0: i32) -> (i32, i32) {
    %c0_i32 = arith.constant 0 : i32
    %c0_i32_0 = arith.constant 0 : i32
    return %c0_i32, %arg0 : i32, i32
  }
}

</mosaic_0001>

<llo_original>
// kernel: tpu_custom_call.1
$region0: #{tpu_custom_call.1}
  #allocation0 [shape = 'u32[]', space=smem, size = 0x4, offset = 0x4, fixed_abs, tag = 'smem constant byte address 0x4 - core index']
  #allocation1 [shape = 'u32[144,128]{1,0:T(1,128)}', space=vmem, size = 0x12000, scoped, tag = 'internal scratch']
  %s0 = inlined_call_operand.hbm [shape: f32[8,128], index: 0, kind: input, shape index: {}]
  %s1 = inlined_call_operand.hbm [shape: f32[8,128], index: 1, kind: output, shape index: {}]
  %s2 = sld [smem:[#allocation0]]
  $region18: #{tpu_custom_call.1} parent=0
    _
  %s4 = ssub.s32 1, %s2
  %s5 = scalar_select 0, %s4, %s2
  $region1: #{tpu_custom_call.1} parent=0
    #allocation2 [shape = 'u8[4096]{0}', space=vmem, size = 0x1000, scoped, tag = 'input window, operand 0, single buffered']
    #allocation3 [shape = 's32[1]{0}', space=sflag, size = 0x4, scoped, tag = 'scoped memory for tpu_custom_call.1']
    #allocation4 [shape = 's32[1]{0}', space=sflag, size = 0x4, scoped, tag = 'scoped memory for tpu_custom_call.1']
    #allocation5 [shape = 'u8[4096]{0}', space=vmem, size = 0x1000, scoped, tag = 'output window, operand 0, single buffered']
    %6 = vsyncpa [#allocation3], 0
    %7 = vsyncpa [#allocation4], 0
    // Predicated region
    $region2: #{tpu_custom_call.1} parent=1 // pred_check
      _
    $region3: #{tpu_custom_call.1} parent=1 // pred_check_branch
      %9 = sbr.rel (0) target = $region5
    $region4: #{tpu_custom_call.1} parent=1 // pred_region
      %s11 = ssub.s32 128, 128
      %12 = vsyncadd [#allocation3], %s11
      %s14 = sshll.u32 [#allocation2], 4
      %s15 = int_to_ptr.vmem [resolvable:$true] %s14
      %17 = dma.hbm_to_vmem [thread:$0]  %s0, 128, %s15, [#allocation3]
    $region5: #{tpu_custom_call.1} parent=1 // pred_fallthru
      _
    // Predicated region
    $region6: #{tpu_custom_call.1} parent=1 // pred_check
      _
    $region7: #{tpu_custom_call.1} parent=1 // pred_check_branch
      %19 = sbr.rel (0) target = $region9
    $region8: #{tpu_custom_call.1} parent=1 // pred_region
      %20 = dma.done [#allocation3], 128
    $region9: #{tpu_custom_call.1} parent=1 // pred_fallthru
      _
    %v21 = vld [vmem:[#allocation2] sm:$0xff]
    %v22 = vrot.slane %v21, 4
    %v23 = vadd.f32 %v21, %v22
    %v24 = vrot.slane %v23, 2
    %v25 = vadd.f32 %v23, %v24
    %v26 = vrot.slane %v25, 1
    %v27 = vadd.f32 %v25, %v26
    %v28 = vmul.f32 %v27, 0.125
    %v29 = vsub.f32 %v21, %v28
    %v30 = vmul.f32 %v29, %v29
    %v31 = vrot.slane %v30, 4
    %v32 = vadd.f32 %v30, %v31
    %v33 = vrot.slane %v32, 2
    %v34 = vadd.f32 %v32, %v33
    %v35 = vrot.slane %v34, 1
    %v36 = vadd.f32 %v34, %v35
    %v37 = vmul.f32 %v36, 0.125
    %v38 = vrsqrt.pop %v37
    %v39 = vmul.f32 %v37, %v38
    %vm40 = vcmp.eq.f32.partialorder %v37, inf
    %v41 = vsel %vm40, %v37, %v39
    %vm42 = vcmp.eq.f32.partialorder %v37, 0.0
    %v43 = vand.u32 %v37, 2147483648
    %v44 = vsel %vm42, %v43, %v41
    %v45 = vadd.f32 %v44, 1e-05
    %v46 = vrcp.pop %v45
    %v47 = vmul.f32 %v29, %v46
    %48 = vst [vmem:[#allocation5] sm:$0xff] %v47
    // Predicated region
    $region10: #{tpu_custom_call.1} parent=1 // pred_check
      _
    $region11: #{tpu_custom_call.1} parent=1 // pred_check_branch
      %50 = sbr.rel (0) target = $region13
    $region12: #{tpu_custom_call.1} parent=1 // pred_region
      %s52 = ssub.s32 128, 128
      %53 = vsyncadd [#allocation4], %s52
      %s55 = sshll.u32 [#allocation5], 4
      %s56 = int_to_ptr.vmem [resolvable:$true] %s55
      %58 = dma.vmem_to_hbm [thread:$0]  %s56, 128, %s1, [#allocation4]
    $region13: #{tpu_custom_call.1} parent=1 // pred_fallthru
      _
    // Predicated region
    $region14: #{tpu_custom_call.1} parent=1 // pred_check
      _
    $region15: #{tpu_custom_call.1} parent=1 // pred_check_branch
      %60 = sbr.rel (0) target = $region17
    $region16: #{tpu_custom_call.1} parent=1 // pred_region
      %61 = dma.done [#allocation4], 128
    $region17: #{tpu_custom_call.1} parent=1 // pred_fallthru
      _
    %62 = vsyncpa [#allocation3], 1
    %63 = vsyncpa [#allocation4], 1

</llo_original>
